<compile_context>
chip_gen: v7x
topology: tpu7x:2x2x1
jax: 0.10.0
libtpu: 0.0.40
codegen_flags: <defaults>
</compile_context>

<pallas_src>
import jax
import jax.numpy as jnp
from jax.experimental import pallas as pl
from jax.experimental.pallas import tpu as pltpu


def mlp_kernel(x_ref, w1_ref, b1_ref, w2_ref, b2_ref, w3_ref, b3_ref, o_ref):
    # fc1 + relu  (bf16 MXU inputs, f32 accumulation and elementwise math)
    h1 = jnp.dot(x_ref[...], w1_ref[...], preferred_element_type=jnp.float32)
    h1 = jnp.maximum(h1 + b1_ref[...], 0.0).astype(jnp.bfloat16)
    # fc2 + relu
    h2 = jnp.dot(h1, w2_ref[...], preferred_element_type=jnp.float32)
    h2 = jnp.maximum(h2 + b2_ref[...], 0.0).astype(jnp.bfloat16)
    # fc3 + sigmoid
    logits = jnp.dot(h2, w3_ref[...], preferred_element_type=jnp.float32) + b3_ref[...]
    o_ref[...] = jax.nn.sigmoid(logits)


def _pad_to(a, shape):
    pads = [(0, t - s) for s, t in zip(a.shape, shape)]
    return jnp.pad(a, pads)


def net_forward(x, w1, b1, w2, b2, w3, b3, *, batch_tile=256):
    B, F = x.shape
    H1 = w1.shape[1]   # 100
    H2 = w2.shape[1]   # 50
    O = w3.shape[1]    # 1

    # Lane-align hidden dims and pad the batch to a whole number of tiles.
    H1p = pl.cdiv(H1, 128) * 128
    H2p = pl.cdiv(H2, 128) * 128
    Bp = pl.cdiv(B, batch_tile) * batch_tile

    # Zero-padding is exact: padded bias lanes are 0, so ReLU(0 + 0) = 0 and the
    # padded columns/rows contribute nothing to the next layer.
    xp = _pad_to(x, (Bp, F)).astype(jnp.bfloat16)
    w1p = _pad_to(w1, (F, H1p)).astype(jnp.bfloat16)
    b1p = _pad_to(b1, (1, H1p)).astype(jnp.float32)
    w2p = _pad_to(w2, (H1p, H2p)).astype(jnp.bfloat16)
    b2p = _pad_to(b2, (1, H2p)).astype(jnp.float32)
    w3p = _pad_to(w3, (H2p, O)).astype(jnp.bfloat16)
    b3p = b3.astype(jnp.float32)

    grid = (Bp // batch_tile,)

    out = pl.pallas_call(
        mlp_kernel,
        out_shape=jax.ShapeDtypeStruct((Bp, O), jnp.float32),
        grid_spec=pl.GridSpec(
            grid=grid,
            in_specs=[
                pl.BlockSpec((batch_tile, F), lambda i: (i, 0)),   # x tile (streamed)
                pl.BlockSpec((F, H1p), lambda i: (0, 0)),          # w1 (VMEM-resident)
                pl.BlockSpec((1, H1p), lambda i: (0, 0)),          # b1
                pl.BlockSpec((H1p, H2p), lambda i: (0, 0)),        # w2
                pl.BlockSpec((1, H2p), lambda i: (0, 0)),          # b2
                pl.BlockSpec((H2p, O), lambda i: (0, 0)),          # w3
                pl.BlockSpec((1, O), lambda i: (0, 0)),            # b3
            ],
            out_specs=pl.BlockSpec((batch_tile, O), lambda i: (i, 0)),
        ),
        compiler_params=pltpu.CompilerParams(
            dimension_semantics=("parallel",),
        ),
    )(xp, w1p, b1p, w2p, b2p, w3p, b3p)

    return out[:B]


def init_linear_params(key, fan_in, fan_out):
    # Deterministic init mimicking PyTorch nn.Linear default (uniform +/- 1/sqrt(fan_in)).
    kw, kb = jax.random.split(key)
    bound = 1.0 / jnp.sqrt(fan_in)
    # stored as (in, out) = transpose of PyTorch's (out, in)
    w = jax.random.uniform(kw, (fan_in, fan_out), jnp.float32, -bound, bound)
    b = jax.random.uniform(kb, (1, fan_out), jnp.float32, -bound, bound)
    return w, b


def reference_forward(x, w1, b1, w2, b2, w3, b3):
    h1 = jnp.maximum(x @ w1 + b1, 0.0)
    h2 = jnp.maximum(h1 @ w2 + b2, 0.0)
    return jax.nn.sigmoid(h2 @ w3 + b3)


if __name__ == "__main__":
    n_features = 32
    batch = 200  # non-multiple of the tile: exercises batch padding + a 2-step grid

    key = jax.random.PRNGKey(0)
    kx, k1, k2, k3 = jax.random.split(key, 4)

    x = jax.random.normal(kx, (batch, n_features), jnp.float32)
    w1, b1 = init_linear_params(k1, n_features, 100)
    w2, b2 = init_linear_params(k2, 100, 50)
    w3, b3 = init_linear_params(k3, 50, 1)

    out = net_forward(x, w1, b1, w2, b2, w3, b3, batch_tile=128)
    out = jax.block_until_ready(out)

    ref = reference_forward(x, w1, b1, w2, b2, w3, b3)
    assert out.shape == (batch, 1)
    # bf16 MXU inputs (f32 accumulation) vs. pure-f32 reference -> relaxed tolerance.
    assert jnp.allclose(out, ref, atol=1e-2, rtol=1e-2), float(jnp.max(jnp.abs(out - ref)))

    print("KERNEL_OK")
</pallas_src>

<mosaic_0001>
module attributes {stable_mosaic.version = 11 : i64} {
  func.func @mlp_kernel(%arg0: i32, %arg1: memref<128x32xbf16, #tpu.memory_space<vmem>>, %arg2: memref<32x128xbf16, #tpu.memory_space<vmem>>, %arg3: memref<1x128xf32, #tpu.memory_space<vmem>>, %arg4: memref<128x128xbf16, #tpu.memory_space<vmem>>, %arg5: memref<1x128xf32, #tpu.memory_space<vmem>>, %arg6: memref<128x1xbf16, #tpu.memory_space<vmem>>, %arg7: memref<1x1xf32, #tpu.memory_space<vmem>>, %arg8: memref<128x1xf32, #tpu.memory_space<vmem>>) attributes {dimension_semantics = [#tpu.dimension_semantics<parallel>], iteration_bounds = array<i64: 2>, scalar_prefetch = 0 : i64, scratch_operands = 0 : i64, tpu.core_type = #tpu.core_type<tc>, window_params = [{transform_indices = @transform_0, window_bounds = array<i64: 128, 32>}, {pipeline_mode = #tpu.pipeline_mode<synchronous>, transform_indices = @transform_1, window_bounds = array<i64: 32, 128>}, {pipeline_mode = #tpu.pipeline_mode<synchronous>, transform_indices = @transform_2, window_bounds = array<i64: 1, 128>}, {pipeline_mode = #tpu.pipeline_mode<synchronous>, transform_indices = @transform_3, window_bounds = array<i64: 128, 128>}, {pipeline_mode = #tpu.pipeline_mode<synchronous>, transform_indices = @transform_4, window_bounds = array<i64: 1, 128>}, {pipeline_mode = #tpu.pipeline_mode<synchronous>, transform_indices = @transform_5, window_bounds = array<i64: 128, 1>}, {pipeline_mode = #tpu.pipeline_mode<synchronous>, transform_indices = @transform_6, window_bounds = array<i64: 1, 1>}, {transform_indices = @transform_7, window_bounds = array<i64: 128, 1>}]} {
    %c0 = arith.constant 0 : index
    %c0_0 = arith.constant 0 : index
    %0 = vector.load %arg1[%c0, %c0_0] : memref<128x32xbf16, #tpu.memory_space<vmem>>, vector<128x32xbf16>
    %c0_1 = arith.constant 0 : index
    %c0_2 = arith.constant 0 : index
    %1 = vector.load %arg2[%c0_1, %c0_2] : memref<32x128xbf16, #tpu.memory_space<vmem>>, vector<32x128xbf16>
    %cst = arith.constant dense<0.000000e+00> : vector<128x128xf32>
    %2 = tpu.matmul %0, %1, %cst {dimension_numbers = #tpu.dot_dimension_numbers<[1], [0], [0], [1], [0, 0, 1, 1], [], []>} : vector<128x32xbf16>, vector<32x128xbf16>, vector<128x128xf32> -> vector<128x128xf32>
    %c0_3 = arith.constant 0 : index
    %c0_4 = arith.constant 0 : index
    %3 = vector.load %arg3[%c0_3, %c0_4] : memref<1x128xf32, #tpu.memory_space<vmem>>, vector<1x128xf32>
    %4 = vector.broadcast %3 : vector<1x128xf32> to vector<128x128xf32>
    %5 = arith.addf %2, %4 : vector<128x128xf32>
    %cst_5 = arith.constant 0.000000e+00 : f32
    %6 = vector.broadcast %cst_5 : f32 to vector<128x128xf32>
    %7 = arith.maximumf %5, %6 : vector<128x128xf32>
    %8 = arith.truncf %7 : vector<128x128xf32> to vector<128x128xbf16>
    %c0_6 = arith.constant 0 : index
    %c0_7 = arith.constant 0 : index
    %9 = vector.load %arg4[%c0_6, %c0_7] : memref<128x128xbf16, #tpu.memory_space<vmem>>, vector<128x128xbf16>
    %cst_8 = arith.constant dense<0.000000e+00> : vector<128x128xf32>
    %10 = tpu.matmul %8, %9, %cst_8 {dimension_numbers = #tpu.dot_dimension_numbers<[1], [0], [0], [1], [0, 0, 1, 1], [], []>} : vector<128x128xbf16>, vector<128x128xbf16>, vector<128x128xf32> -> vector<128x128xf32>
    %c0_9 = arith.constant 0 : index
    %c0_10 = arith.constant 0 : index
    %11 = vector.load %arg5[%c0_9, %c0_10] : memref<1x128xf32, #tpu.memory_space<vmem>>, vector<1x128xf32>
    %12 = vector.broadcast %11 : vector<1x128xf32> to vector<128x128xf32>
    %13 = arith.addf %10, %12 : vector<128x128xf32>
    %cst_11 = arith.constant 0.000000e+00 : f32
    %14 = vector.broadcast %cst_11 : f32 to vector<128x128xf32>
    %15 = arith.maximumf %13, %14 : vector<128x128xf32>
    %16 = arith.truncf %15 : vector<128x128xf32> to vector<128x128xbf16>
    %c0_12 = arith.constant 0 : index
    %c0_13 = arith.constant 0 : index
    %17 = vector.load %arg6[%c0_12, %c0_13] : memref<128x1xbf16, #tpu.memory_space<vmem>>, vector<128x1xbf16>
    %cst_14 = arith.constant dense<0.000000e+00> : vector<128x1xf32>
    %18 = tpu.matmul %16, %17, %cst_14 {dimension_numbers = #tpu.dot_dimension_numbers<[1], [0], [0], [1], [0, 0, 1, 1], [], []>} : vector<128x128xbf16>, vector<128x1xbf16>, vector<128x1xf32> -> vector<128x1xf32>
    %c0_15 = arith.constant 0 : index
    %c0_16 = arith.constant 0 : index
    %19 = vector.load %arg7[%c0_15, %c0_16] : memref<1x1xf32, #tpu.memory_space<vmem>>, vector<1x1xf32>
    %20 = vector.broadcast %19 : vector<1x1xf32> to vector<128x1xf32>
    %21 = arith.addf %18, %20 : vector<128x1xf32>
    %22 = arith.negf %21 : vector<128x1xf32>
    %23 = math.exp %22 : vector<128x1xf32>
    %cst_17 = arith.constant 1.000000e+00 : f32
    %24 = vector.broadcast %cst_17 : f32 to vector<128x1xf32>
    %25 = arith.addf %24, %23 : vector<128x1xf32>
    %26 = arith.divf %24, %25 : vector<128x1xf32>
    %c0_18 = arith.constant 0 : index
    %c0_19 = arith.constant 0 : index
    %27 = vector.load %arg8[%c0_18, %c0_19] : memref<128x1xf32, #tpu.memory_space<vmem>>, vector<128x1xf32>
    tpu.vector_store %arg8[%c0_18, %c0_19], %26 {strides = array<i32>} : memref<128x1xf32, #tpu.memory_space<vmem>>, vector<128x1xf32>,
    return
  }
  func.func @transform_0(%arg0: i32) -> (i32, i32) {
    %c0_i32 = arith.constant 0 : i32
    %c0_i32_0 = arith.constant 0 : i32
    return %arg0, %c0_i32 : i32, i32
  }
  func.func @transform_1(%arg0: i32) -> (i32, i32) {
    %c0_i32 = arith.constant 0 : i32
    %c0_i32_0 = arith.constant 0 : i32
    %c0_i32_1 = arith.constant 0 : i32
    return %c0_i32, %c0_i32_0 : i32, i32
  }
  func.func @transform_2(%arg0: i32) -> (i32, i32) {
    %c0_i32 = arith.constant 0 : i32
    %c0_i32_0 = arith.constant 0 : i32
    %c0_i32_1 = arith.constant 0 : i32
    return %c0_i32, %c0_i32_0 : i32, i32
  }
  func.func @transform_3(%arg0: i32) -> (i32, i32) {
    %c0_i32 = arith.constant 0 : i32
    %c0_i32_0 = arith.constant 0 : i32
    %c0_i32_1 = arith.constant 0 : i32
    return %c0_i32, %c0_i32_0 : i32, i32
  }
  func.func @transform_4(%arg0: i32) -> (i32, i32) {
    %c0_i32 = arith.constant 0 : i32
    %c0_i32_0 = arith.constant 0 : i32
    %c0_i32_1 = arith.constant 0 : i32
    return %c0_i32, %c0_i32_0 : i32, i32
  }
  func.func @transform_5(%arg0: i32) -> (i32, i32) {
    %c0_i32 = arith.constant 0 : i32
    %c0_i32_0 = arith.constant 0 : i32
    %c0_i32_1 = arith.constant 0 : i32
    return %c0_i32, %c0_i32_0 : i32, i32
  }
  func.func @transform_6(%arg0: i32) -> (i32, i32) {
    %c0_i32 = arith.constant 0 : i32
    %c0_i32_0 = arith.constant 0 : i32
    %c0_i32_1 = arith.constant 0 : i32
    return %c0_i32, %c0_i32_0 : i32, i32
  }
  func.func @transform_7(%arg0: i32) -> (i32, i32) {
    %c0_i32 = arith.constant 0 : i32
    %c0_i32_0 = arith.constant 0 : i32
    return %arg0, %c0_i32 : i32, i32
  }
}

</mosaic_0001>

<llo_original>
// kernel: tpu_custom_call.1
$region0: #{tpu_custom_call.1}
  #allocation0 [shape = 'u32[]', space=smem, size = 0x4, offset = 0x4, fixed_abs, tag = 'smem constant byte address 0x4 - core index']
  #allocation1 [shape = 'u32[144,128]{1,0:T(1,128)}', space=vmem, size = 0x12000, scoped, tag = 'internal scratch']
  #allocation2 [shape = 'f32[1,1]{1,0:T(1,128)S(1)}', space=vmem, size = 0x200, scoped, tag = 'scoped memory for tpu_custom_call.1']
  %s0 = inlined_call_operand.vmem [shape: bf16[256,32], index: 0, kind: input, shape index: {}]
  %s1 = inlined_call_operand.vmem [shape: bf16[32,128], index: 1, kind: input, shape index: {}]
  %s2 = inlined_call_operand.vmem [shape: f32[1,128], index: 2, kind: input, shape index: {}]
  %s3 = inlined_call_operand.vmem [shape: bf16[128,128], index: 3, kind: input, shape index: {}]
  %s4 = inlined_call_operand.vmem [shape: f32[1,128], index: 4, kind: input, shape index: {}]
  %s5 = inlined_call_operand.vmem [shape: bf16[128,1], index: 5, kind: input, shape index: {}]
  %s6 = inlined_call_operand.<no memory space> [shape: f32[1,1], index: 6, kind: input, shape index: {}]
  %s7 = inlined_call_operand.vmem [shape: f32[256,1], index: 7, kind: output, shape index: {}]
  %s8 = sld [smem:[#allocation0]]
  $region61: #{tpu_custom_call.1} parent=0
    _
  %s10 = ssub.s32 1, %s8
  %s11 = scalar_select 0, %s10, %s8
  %v12 = vstv %s6
  %13 = vst [vmem:[#allocation2] sm:$0x1] %v12
  loop: start=0, step=1, limit=4
  $region2: #{tpu_custom_call.1} parent=0 // loop_pre_header
    _
  $region3: #{tpu_custom_call.1} parent=0 // loop_header
    %s15 = sphi 0, %s19
    %p16 = scmp.ge.s32.totalorder %s15, 4
    %s25 = sphi 0, %s27
    %s28 = sphi 0, %s25
    %s29 = sphi 0, %s28
    %s45 = sphi 0, %s29
    %s49 = sphi 0, %s49
    %s51 = sphi 0, %s49
    %s52 = sphi 0, %s51
    %s66 = sphi 0, %s52
    %s70 = sphi 0, %s70
    %s72 = sphi 0, %s70
    %s73 = sphi 0, %s72
    %s87 = sphi 0, %s73
    %s91 = sphi 0, %s91
    %s93 = sphi 0, %s91
    %s94 = sphi 0, %s93
    %s108 = sphi 0, %s94
    %s112 = sphi 0, %s112
    %s114 = sphi 0, %s112
    %s115 = sphi 0, %s114
    %s129 = sphi 0, %s115
    %s133 = sphi 0, %s133
    %s135 = sphi 0, %s133
    %s136 = sphi 0, %s135
    %s150 = sphi 0, %s136
    %s154 = sphi 0, %s154
    %s156 = sphi 0, %s154
    %s157 = sphi 0, %s156
    %s171 = sphi 0, %s157
    %s177 = sphi 0, %s179
    %s180 = sphi 0, %s177
    %s181 = sphi 0, %s180
    %s197 = sphi 0, %s181
  $region4: #{tpu_custom_call.1} parent=0 // loop_header_branch
    %18 = sbr.rel (%p16) target = $region8
  $region5: #{tpu_custom_call.1} parent=0 // loop_body
    %s20 = ssub.s32 %s15, 1
    %s21 = ssub.s32 %s15, 2
    %s22 = sadd.s32 %s15, 1
    %s23 = ssub.s32 %s15, %s22
    %p24 = scmp.eq.s32.totalorder %s23, 0
    %s26 = sadd.s32 %s25, 1
    %s27 = scalar_select %p24, %s25, %s26
    %p30 = pneg %p24
    %p31 = scmp.eq.s32.totalorder %s15, 1
    %p32 = por %p30, %p31
    %p33 = scmp.ne.s32.totalorder %s25, %s28
    %p34 = scmp.eq.s32.totalorder %s15, 0
    %p35 = por %p33, %p34
    %p36 = scmp.ne.s32.totalorder %s25, %s28
    %p37 = scmp.eq.s32.totalorder %s20, 1
    %p38 = por %p36, %p37
    %p39 = scmp.ne.s32.totalorder %s28, %s29
    %p40 = scmp.eq.s32.totalorder %s20, 0
    %p41 = por %p39, %p40
    %p42 = scmp.ne.s32.totalorder %s28, %s29
    %p43 = scmp.eq.s32.totalorder %s21, 1
    %p44 = por %p42, %p43
    %p46 = scmp.ne.s32.totalorder %s29, %s45
    %p47 = scmp.eq.s32.totalorder %s21, 0
    %p48 = por %p46, %p47
    %s50 = sadd.s32 %s49, 1
    %p53 = scmp.eq.s32.totalorder %s15, 1
    %p54 = scmp.ne.s32.totalorder %s49, %s51
    %p55 = scmp.eq.s32.totalorder %s15, 0
    %p56 = por %p54, %p55
    %p57 = scmp.ne.s32.totalorder %s49, %s51
    %p58 = scmp.eq.s32.totalorder %s20, 1
    %p59 = por %p57, %p58
    %p60 = scmp.ne.s32.totalorder %s51, %s52
    %p61 = scmp.eq.s32.totalorder %s20, 0
    %p62 = por %p60, %p61
    %p63 = scmp.ne.s32.totalorder %s51, %s52
    %p64 = scmp.eq.s32.totalorder %s21, 1
    %p65 = por %p63, %p64
    %p67 = scmp.ne.s32.totalorder %s52, %s66
    %p68 = scmp.eq.s32.totalorder %s21, 0
    %p69 = por %p67, %p68
    %s71 = sadd.s32 %s70, 1
    %p74 = scmp.eq.s32.totalorder %s15, 1
    %p75 = scmp.ne.s32.totalorder %s70, %s72
    %p76 = scmp.eq.s32.totalorder %s15, 0
    %p77 = por %p75, %p76
    %p78 = scmp.ne.s32.totalorder %s70, %s72
    %p79 = scmp.eq.s32.totalorder %s20, 1
    %p80 = por %p78, %p79
    %p81 = scmp.ne.s32.totalorder %s72, %s73
    %p82 = scmp.eq.s32.totalorder %s20, 0
    %p83 = por %p81, %p82
    %p84 = scmp.ne.s32.totalorder %s72, %s73
    %p85 = scmp.eq.s32.totalorder %s21, 1
    %p86 = por %p84, %p85
    %p88 = scmp.ne.s32.totalorder %s73, %s87
    %p89 = scmp.eq.s32.totalorder %s21, 0
    %p90 = por %p88, %p89
    %s92 = sadd.s32 %s91, 1
    %p95 = scmp.eq.s32.totalorder %s15, 1
    %p96 = scmp.ne.s32.totalorder %s91, %s93
    %p97 = scmp.eq.s32.totalorder %s15, 0
    %p98 = por %p96, %p97
    %p99 = scmp.ne.s32.totalorder %s91, %s93
    %p100 = scmp.eq.s32.totalorder %s20, 1
    %p101 = por %p99, %p100
    %p102 = scmp.ne.s32.totalorder %s93, %s94
    %p103 = scmp.eq.s32.totalorder %s20, 0
    %p104 = por %p102, %p103
    %p105 = scmp.ne.s32.totalorder %s93, %s94
    %p106 = scmp.eq.s32.totalorder %s21, 1
    %p107 = por %p105, %p106
    %p109 = scmp.ne.s32.totalorder %s94, %s108
    %p110 = scmp.eq.s32.totalorder %s21, 0
    %p111 = por %p109, %p110
    %s113 = sadd.s32 %s112, 1
    %p116 = scmp.eq.s32.totalorder %s15, 1
    %p117 = scmp.ne.s32.totalorder %s112, %s114
    %p118 = scmp.eq.s32.totalorder %s15, 0
    %p119 = por %p117, %p118
    %p120 = scmp.ne.s32.totalorder %s112, %s114
    %p121 = scmp.eq.s32.totalorder %s20, 1
    %p122 = por %p120, %p121
    %p123 = scmp.ne.s32.totalorder %s114, %s115
    %p124 = scmp.eq.s32.totalorder %s20, 0
    %p125 = por %p123, %p124
    %p126 = scmp.ne.s32.totalorder %s114, %s115
    %p127 = scmp.eq.s32.totalorder %s21, 1
    %p128 = por %p126, %p127
    %p130 = scmp.ne.s32.totalorder %s115, %s129
    %p131 = scmp.eq.s32.totalorder %s21, 0
    %p132 = por %p130, %p131
    %s134 = sadd.s32 %s133, 1
    %p137 = scmp.eq.s32.totalorder %s15, 1
    %p138 = scmp.ne.s32.totalorder %s133, %s135
    %p139 = scmp.eq.s32.totalorder %s15, 0
    %p140 = por %p138, %p139
    %p141 = scmp.ne.s32.totalorder %s133, %s135
    %p142 = scmp.eq.s32.totalorder %s20, 1
    %p143 = por %p141, %p142
    %p144 = scmp.ne.s32.totalorder %s135, %s136
    %p145 = scmp.eq.s32.totalorder %s20, 0
    %p146 = por %p144, %p145
    %p147 = scmp.ne.s32.totalorder %s135, %s136
    %p148 = scmp.eq.s32.totalorder %s21, 1
    %p149 = por %p147, %p148
    %p151 = scmp.ne.s32.totalorder %s136, %s150
    %p152 = scmp.eq.s32.totalorder %s21, 0
    %p153 = por %p151, %p152
    %s155 = sadd.s32 %s154, 1
    %p158 = scmp.eq.s32.totalorder %s15, 1
    %p159 = scmp.ne.s32.totalorder %s154, %s156
    %p160 = scmp.eq.s32.totalorder %s15, 0
    %p161 = por %p159, %p160
    %p162 = scmp.ne.s32.totalorder %s154, %s156
    %p163 = scmp.eq.s32.totalorder %s20, 1
    %p164 = por %p162, %p163
    %p165 = scmp.ne.s32.totalorder %s156, %s157
    %p166 = scmp.eq.s32.totalorder %s20, 0
    %p167 = por %p165, %p166
    %p168 = scmp.ne.s32.totalorder %s156, %s157
    %p169 = scmp.eq.s32.totalorder %s21, 1
    %p170 = por %p168, %p169
    %p172 = scmp.ne.s32.totalorder %s157, %s171
    %p173 = scmp.eq.s32.totalorder %s21, 0
    %p174 = por %p172, %p173
    %s175 = ssub.s32 %s15, %s22
    %p176 = scmp.eq.s32.totalorder %s175, 0
    %s178 = sadd.s32 %s177, 1
    %s179 = scalar_select %p176, %s177, %s178
    %p182 = pneg %p176
    %p183 = scmp.eq.s32.totalorder %s15, 1
    %p184 = por %p182, %p183
    %p185 = scmp.ne.s32.totalorder %s177, %s180
    %p186 = scmp.eq.s32.totalorder %s15, 0
    %p187 = por %p185, %p186
    %p188 = scmp.ne.s32.totalorder %s177, %s180
    %p189 = scmp.eq.s32.totalorder %s20, 1
    %p190 = por %p188, %p189
    %p191 = scmp.ne.s32.totalorder %s180, %s181
    %p192 = scmp.eq.s32.totalorder %s20, 0
    %p193 = por %p191, %p192
    %p194 = scmp.ne.s32.totalorder %s180, %s181
    %p195 = scmp.eq.s32.totalorder %s21, 1
    %p196 = por %p194, %p195
    %p198 = scmp.ne.s32.totalorder %s181, %s197
    %p199 = scmp.eq.s32.totalorder %s21, 0
    %p200 = por %p198, %p199
    %p201 = scmp.le.s32.totalorder 1, %s15
    %p202 = scmp.lt.s32.totalorder %s15, 3
    %p203 = pnand %p201, %p202
    %p204 = pneg %p203
    // Predicated region
    $region9: #{tpu_custom_call.1} parent=5 // pred_check
      _
    $region10: #{tpu_custom_call.1} parent=5 // pred_check_branch
      %206 = sbr.rel (%p203) target = $region12
    $region11: #{tpu_custom_call.1} parent=5 // pred_region
      %s207 = ssub.s32 %s15, 1
      // Predicated region
      $region13: #{tpu_custom_call.1} parent=11 // pred_check
        %p208 = pneg %p62
      $region14: #{tpu_custom_call.1} parent=11 // pred_check_branch
        %210 = sbr.rel (%p208) target = $region16
      $region15: #{tpu_custom_call.1} parent=11 // pred_region
        _
      $region16: #{tpu_custom_call.1} parent=11 // pred_fallthru
        _
      // Predicated region
      $region17: #{tpu_custom_call.1} parent=11 // pred_check
        %p211 = pneg %p83
      $region18: #{tpu_custom_call.1} parent=11 // pred_check_branch
        %213 = sbr.rel (%p211) target = $region20
      $region19: #{tpu_custom_call.1} parent=11 // pred_region
        _
      $region20: #{tpu_custom_call.1} parent=11 // pred_fallthru
        _
      // Predicated region
      $region21: #{tpu_custom_call.1} parent=11 // pred_check
        %p214 = pneg %p104
      $region22: #{tpu_custom_call.1} parent=11 // pred_check_branch
        %216 = sbr.rel (%p214) target = $region24
      $region23: #{tpu_custom_call.1} parent=11 // pred_region
        _
      $region24: #{tpu_custom_call.1} parent=11 // pred_fallthru
        _
      // Predicated region
      $region25: #{tpu_custom_call.1} parent=11 // pred_check
        %p217 = pneg %p125
      $region26: #{tpu_custom_call.1} parent=11 // pred_check_branch
        %219 = sbr.rel (%p217) target = $region28
      $region27: #{tpu_custom_call.1} parent=11 // pred_region
        _
      $region28: #{tpu_custom_call.1} parent=11 // pred_fallthru
        _
      // Predicated region
      $region29: #{tpu_custom_call.1} parent=11 // pred_check
        %p220 = pneg %p146
      $region30: #{tpu_custom_call.1} parent=11 // pred_check_branch
        %222 = sbr.rel (%p220) target = $region32
      $region31: #{tpu_custom_call.1} parent=11 // pred_region
        _
      $region32: #{tpu_custom_call.1} parent=11 // pred_fallthru
        _
      // Predicated region
      $region33: #{tpu_custom_call.1} parent=11 // pred_check
        %p223 = pneg %p167
      $region34: #{tpu_custom_call.1} parent=11 // pred_check_branch
        %225 = sbr.rel (%p223) target = $region36
      $region35: #{tpu_custom_call.1} parent=11 // pred_region
        _
      $region36: #{tpu_custom_call.1} parent=11 // pred_fallthru
        _
    $region12: #{tpu_custom_call.1} parent=5 // pred_fallthru
      _
    %p226 = scmp.lt.s32.totalorder %s15, 2
    // Predicated region
    $region37: #{tpu_custom_call.1} parent=5 // pred_check
      %p227 = pneg %p226
    $region38: #{tpu_custom_call.1} parent=5 // pred_check_branch
      %229 = sbr.rel (%p227) target = $region40
    $region39: #{tpu_custom_call.1} parent=5 // pred_region
      // Predicated region
      $region41: #{tpu_custom_call.1} parent=39 // pred_check
        %p230 = pneg %p35
      $region42: #{tpu_custom_call.1} parent=39 // pred_check_branch
        %232 = sbr.rel (%p230) target = $region44
      $region43: #{tpu_custom_call.1} parent=39 // pred_region
        %s233 = smul.u32 16, %s15
        %p234 = scmp.lt.s32.totalorder %s233, 31
        %s235 = scalar_select %p234, %s233, 31
        %s236 = smul.addr %s235, 4
        %s237 = scalar_lea.vmem %s0, %s236
        %s238 = smul.u32 16, %s15
      $region44: #{tpu_custom_call.1} parent=39 // pred_fallthru
        _
    $region40: #{tpu_custom_call.1} parent=5 // pred_fallthru
      _
    %p239 = scmp.le.s32.totalorder 1, %s15
    %p240 = scmp.lt.s32.totalorder %s15, 3
    %p241 = pnand %p239, %p240
    %p242 = pneg %p241
    // Predicated region
    $region45: #{tpu_custom_call.1} parent=5 // pred_check
      _
    $region46: #{tpu_custom_call.1} parent=5 // pred_check_branch
      %244 = sbr.rel (%p241) target = $region48
    $region47: #{tpu_custom_call.1} parent=5 // pred_region
      %s245 = ssub.s32 %s15, 1
      %s246 = smul.u32 16, %s20
      %p247 = scmp.lt.s32.totalorder %s246, 31
      %s248 = scalar_select %p247, %s246, 31
      %s249 = smul.addr %s248, 4
      %s250 = scalar_lea.vmem %s0, %s249
      %p251 = pneg %p41
      %p252 = pneg %p38
      %p253 = pneg %p62
      %p254 = pneg %p59
      %p255 = pneg %p83
      %p256 = pneg %p80
      %p257 = pneg %p104
      %p258 = pneg %p101
      %p259 = pneg %p125
      %p260 = pneg %p122
      %p261 = pneg %p146
      %p262 = pneg %p143
      %p263 = pneg %p167
      %p264 = pneg %p164
      %p265 = pneg %p193
      %p266 = pneg %p190
      %s267 = smul.u32 16, %s20
      %p268 = scmp.lt.s32.totalorder %s267, 31
      %s269 = scalar_select %p268, %s267, 31
      %s270 = smul.addr %s269, 8
      %s271 = scalar_lea.vmem %s7, %s270
      %s272 = smul.u32 16, %s20
      %p273 = scmp.lt.s32.totalorder %s272, 31
      %s274 = scalar_select %p273, %s272, 31
      %s275 = smul.addr %s274, 4
      %s276 = scalar_lea.vmem %s0, %s275
      %s277 = smul.u32 16, %s20
      %s278 = smul.u32 16, %s20
      %p279 = scmp.lt.s32.totalorder %s278, 31
      %s280 = scalar_select %p279, %s278, 31
      %s281 = smul.addr %s280, 8
      %s282 = scalar_lea.vmem %s7, %s281
      %s283 = smul.u32 16, %s20
      %v285 = vld [vmem:[%s276] sm:$0xf]
      %v286 = vld [vmem:[%s276 + $0x4] sm:$0xf]
      %v287 = vld [vmem:[%s276 + $0x8] sm:$0xf]
      %v288 = vld [vmem:[%s276 + $0xc] sm:$0xf]
      %v289 = vld [vmem:[%s276 + $0x10] sm:$0xf]
      %v290 = vld [vmem:[%s276 + $0x14] sm:$0xf]
      %v291 = vld [vmem:[%s276 + $0x18] sm:$0xf]
      %v292 = vld [vmem:[%s276 + $0x1c] sm:$0xf]
      %v293 = vld [vmem:[%s276 + $0x20] sm:$0xf]
      %v294 = vld [vmem:[%s276 + $0x24] sm:$0xf]
      %v295 = vld [vmem:[%s276 + $0x28] sm:$0xf]
      %v296 = vld [vmem:[%s276 + $0x2c] sm:$0xf]
      %v297 = vld [vmem:[%s276 + $0x30] sm:$0xf]
      %v298 = vld [vmem:[%s276 + $0x34] sm:$0xf]
      %v299 = vld [vmem:[%s276 + $0x38] sm:$0xf]
      %v300 = vld [vmem:[%s276 + $0x3c] sm:$0xf]
      %v301 = vld [vmem:[%s1] sm:$0xf]
      %v302 = vld [vmem:[%s1 + $0x4] sm:$0xf]
      %v303 = vld [vmem:[%s1 + $0x8] sm:$0xf]
      %v304 = vld [vmem:[%s1 + $0xc] sm:$0xf]
      %v305 = vld [vmem:[%s2] sm:$0x1]
      %v307 = vlaneseq
      %v308 = vshrl.u32 %v307, 7
      %v309 = vsub.s32 0, %v308
      %v310 = vrot.slane %v305, %v309
      %v328 = vunpack.c.l.b16 %v285
      %v329 = vunpack.c.l.b16 %v286
      %v330 = vunpack.c.l.b16 %v287
      %v331 = vunpack.c.l.b16 %v288
      %v332 = vunpack.c.l.b16 %v289
      %v333 = vunpack.c.l.b16 %v290
      %v334 = vunpack.c.l.b16 %v291
      %v335 = vunpack.c.l.b16 %v292
      %v336 = vunpack.c.l.b16 %v293
      %v337 = vunpack.c.l.b16 %v294
      %v338 = vunpack.c.l.b16 %v295
      %v339 = vunpack.c.l.b16 %v296
      %v340 = vunpack.c.l.b16 %v297
      %v341 = vunpack.c.l.b16 %v298
      %v342 = vunpack.c.l.b16 %v299
      %v343 = vunpack.c.l.b16 %v300
      %v344 = vpack.c.b16 %v329, %v328
      %v345 = vpack.c.b16 %v331, %v330
      %v346 = vpack.c.b16 %v333, %v332
      %v347 = vpack.c.b16 %v335, %v334
      %v348 = vpack.c.b16 %v337, %v336
      %v349 = vpack.c.b16 %v339, %v338
      %v350 = vpack.c.b16 %v341, %v340
      %v351 = vpack.c.b16 %v343, %v342
      %v356 = vunpack.c.l.b16 %v301
      %v357 = vunpack.c.l.b16 %v302
      %v358 = vunpack.c.l.b16 %v303
      %v359 = vunpack.c.l.b16 %v304
      %v360 = vpack.c.b16 %v357, %v356
      %v361 = vpack.c.b16 %v359, %v358
      %vm364 = vcmask 261120
      %v366 = vsel %vm364, %v344, 0
      %v369 = vsel %vm364, %v345, 0
      %v372 = vsel %vm364, %v346, 0
      %v375 = vsel %vm364, %v347, 0
      %v378 = vsel %vm364, %v348, 0
      %v381 = vsel %vm364, %v349, 0
      %v384 = vsel %vm364, %v350, 0
      %v387 = vsel %vm364, %v351, 0
      %389 = vmatprep.subr.bf16.mxu0 0
      %390 = vmatpush1.bf16.msra.mxu0 %v360
      %391 = vmatprep.subr.bf16.mxu0 0
      %392 = vmatpush1.bf16.msra.mxu0 %v361
      %393 = vmatprep.subr.bf16.mxu0 0
      %394 = vmatpush1.bf16.msra.mxu0 0
      %395 = vmatprep.subr.bf16.mxu0 0
      %396 = vmatpush1.bf16.msra.mxu0 0
      %397 = vmatprep.subr.bf16.mxu0 0
      %398 = vmatpush1.bf16.msra.mxu0 0
      %399 = vmatprep.subr.bf16.mxu0 0
      %400 = vmatpush1.bf16.msra.mxu0 0
      %401 = vmatprep.subr.bf16.mxu0 0
      %402 = vmatpush1.bf16.msra.mxu0 0
      %403 = vmatprep.subr.bf16.mxu0 0
      %404 = vmatpush1.bf16.msra.mxu0 0
      %405 = vmatprep.subr.bf16.mxu0 0
      %406 = vmatpush1.bf16.msra.mxu0 0
      %407 = vmatprep.subr.bf16.mxu0 0
      %408 = vmatpush1.bf16.msra.mxu0 0
      %409 = vmatprep.subr.bf16.mxu0 0
      %410 = vmatpush1.bf16.msra.mxu0 0
      %411 = vmatprep.subr.bf16.mxu0 0
      %412 = vmatpush1.bf16.msra.mxu0 0
      %413 = vmatprep.subr.bf16.mxu0 0
      %414 = vmatpush1.bf16.msra.mxu0 0
      %415 = vmatprep.subr.bf16.mxu0 0
      %416 = vmatpush1.bf16.msra.mxu0 0
      %417 = vmatprep.subr.bf16.mxu0 0
      %418 = vmatpush1.bf16.msra.mxu0 0
      %419 = vmatprep.subr.bf16.mxu0 0
      %420 = vmatpush1.bf16.msra.mxu0 0
      %421 = vmatprep.mubr.bf16.mxu0 0
      %422 = vmatmul.mubr.bf16.gmra.mrb[0].mxu0 %v366
      %v423 = vpop.f32.mrb[0].mxu0
      %v424 = vadd.f32 %v310, %v423
      %v425 = vpop.f32.mrb[0].mxu0
      %v426 = vpop.f32.mrb[0].mxu0
      %v427 = vadd.f32 %v310, %v426
      %v428 = vpop.f32.mrb[0].mxu0
      %429 = vmatprep.mubr.bf16.mxu0 0
      %430 = vmatmul.mubr.bf16.gmra.mrb[0].mxu0 %v369
      %v431 = vpop.f32.mrb[0].mxu0
      %v432 = vadd.f32 %v310, %v431
      %v433 = vpop.f32.mrb[0].mxu0
      %v434 = vpop.f32.mrb[0].mxu0
      %v435 = vadd.f32 %v310, %v434
      %v436 = vpop.f32.mrb[0].mxu0
      %437 = vmatprep.mubr.bf16.mxu0 0
      %438 = vmatmul.mubr.bf16.gmra.mrb[0].mxu0 %v372
      %v439 = vpop.f32.mrb[0].mxu0
      %v440 = vadd.f32 %v310, %v439
      %v441 = vpop.f32.mrb[0].mxu0
      %v442 = vpop.f32.mrb[0].mxu0
      %v443 = vadd.f32 %v310, %v442
      %v444 = vpop.f32.mrb[0].mxu0
      %445 = vmatprep.mubr.bf16.mxu0 0
      %446 = vmatmul.mubr.bf16.gmra.mrb[0].mxu0 %v375
      %v447 = vpop.f32.mrb[0].mxu0
      %v448 = vadd.f32 %v310, %v447
      %v449 = vpop.f32.mrb[0].mxu0
      %v450 = vpop.f32.mrb[0].mxu0
      %v451 = vadd.f32 %v310, %v450
      %v452 = vpop.f32.mrb[0].mxu0
      %453 = vmatprep.mubr.bf16.mxu0 0
      %454 = vmatmul.mubr.bf16.gmra.mrb[0].mxu0 %v378
      %v455 = vpop.f32.mrb[0].mxu0
      %v456 = vadd.f32 %v310, %v455
      %v457 = vpop.f32.mrb[0].mxu0
      %v458 = vpop.f32.mrb[0].mxu0
      %v459 = vadd.f32 %v310, %v458
      %v460 = vpop.f32.mrb[0].mxu0
      %461 = vmatprep.mubr.bf16.mxu0 0
      %462 = vmatmul.mubr.bf16.gmra.mrb[0].mxu0 %v381
      %v463 = vpop.f32.mrb[0].mxu0
      %v464 = vadd.f32 %v310, %v463
      %v465 = vpop.f32.mrb[0].mxu0
      %v466 = vpop.f32.mrb[0].mxu0
      %v467 = vadd.f32 %v310, %v466
      %v468 = vpop.f32.mrb[0].mxu0
      %469 = vmatprep.mubr.bf16.mxu0 0
      %470 = vmatmul.mubr.bf16.gmra.mrb[0].mxu0 %v384
      %v471 = vpop.f32.mrb[0].mxu0
      %v472 = vadd.f32 %v310, %v471
      %v473 = vpop.f32.mrb[0].mxu0
      %v474 = vpop.f32.mrb[0].mxu0
      %v475 = vadd.f32 %v310, %v474
      %v476 = vpop.f32.mrb[0].mxu0
      %477 = vmatprep.mubr.bf16.mxu0 0
      %478 = vmatmul.mubr.bf16.gmra.mrb[0].mxu0 %v387
      %v479 = vpop.f32.mrb[0].mxu0
      %v480 = vadd.f32 %v310, %v479
      %v481 = vpop.f32.mrb[0].mxu0
      %v482 = vpop.f32.mrb[0].mxu0
      %v483 = vadd.f32 %v310, %v482
      %v484 = vpop.f32.mrb[0].mxu0
      %485 = vdwg.mxu0
      %v486 = vmax.f32 %v424, 0.0
      %v487 = vmax.f32 %v427, 0.0
      %v488 = vmax.f32 %v432, 0.0
      %v489 = vmax.f32 %v435, 0.0
      %v490 = vmax.f32 %v440, 0.0
      %v491 = vmax.f32 %v443, 0.0
      %v492 = vmax.f32 %v448, 0.0
      %v493 = vmax.f32 %v451, 0.0
      %v494 = vmax.f32 %v456, 0.0
      %v495 = vmax.f32 %v459, 0.0
      %v496 = vmax.f32 %v464, 0.0
      %v497 = vmax.f32 %v467, 0.0
      %v498 = vmax.f32 %v472, 0.0
      %v499 = vmax.f32 %v475, 0.0
      %v500 = vmax.f32 %v480, 0.0
      %v501 = vmax.f32 %v483, 0.0
      %v502 = vpack.c.bf16 %v487, %v486
      %v503 = vpack.c.bf16 %v489, %v488
      %v504 = vpack.c.bf16 %v491, %v490
      %v505 = vpack.c.bf16 %v493, %v492
      %v506 = vpack.c.bf16 %v495, %v494
      %v507 = vpack.c.bf16 %v497, %v496
      %v508 = vpack.c.bf16 %v499, %v498
      %v509 = vpack.c.bf16 %v501, %v500
      %v510 = vld [vmem:[%s3] sm:$0xf]
      %v511 = vld [vmem:[%s3 + $0x4] sm:$0xf]
      %v512 = vld [vmem:[%s3 + $0x8] sm:$0xf]
      %v513 = vld [vmem:[%s3 + $0xc] sm:$0xf]
      %v514 = vld [vmem:[%s3 + $0x10] sm:$0xf]
      %v515 = vld [vmem:[%s3 + $0x14] sm:$0xf]
      %v516 = vld [vmem:[%s3 + $0x18] sm:$0xf]
      %v517 = vld [vmem:[%s3 + $0x1c] sm:$0xf]
      %v518 = vld [vmem:[%s3 + $0x20] sm:$0xf]
      %v519 = vld [vmem:[%s3 + $0x24] sm:$0xf]
      %v520 = vld [vmem:[%s3 + $0x28] sm:$0xf]
      %v521 = vld [vmem:[%s3 + $0x2c] sm:$0xf]
      %v522 = vld [vmem:[%s3 + $0x30] sm:$0xf]
      %v523 = vld [vmem:[%s3 + $0x34] sm:$0xf]
      %v524 = vld [vmem:[%s3 + $0x38] sm:$0xf]
      %v525 = vld [vmem:[%s3 + $0x3c] sm:$0xf]
      %v526 = vld [vmem:[%s4] sm:$0x1]
      %v528 = vlaneseq
      %v529 = vshrl.u32 %v528, 7
      %v530 = vsub.s32 0, %v529
      %v531 = vrot.slane %v526, %v530
      %v549 = vunpack.c.l.b16 %v510
      %v550 = vunpack.c.l.b16 %v511
      %v551 = vunpack.c.l.b16 %v512
      %v552 = vunpack.c.l.b16 %v513
      %v553 = vunpack.c.l.b16 %v514
      %v554 = vunpack.c.l.b16 %v515
      %v555 = vunpack.c.l.b16 %v516
      %v556 = vunpack.c.l.b16 %v517
      %v557 = vunpack.c.l.b16 %v518
      %v558 = vunpack.c.l.b16 %v519
      %v559 = vunpack.c.l.b16 %v520
      %v560 = vunpack.c.l.b16 %v521
      %v561 = vunpack.c.l.b16 %v522
      %v562 = vunpack.c.l.b16 %v523
      %v563 = vunpack.c.l.b16 %v524
      %v564 = vunpack.c.l.b16 %v525
      %v565 = vpack.c.b16 %v550, %v549
      %v566 = vpack.c.b16 %v552, %v551
      %v567 = vpack.c.b16 %v554, %v553
      %v568 = vpack.c.b16 %v556, %v555
      %v569 = vpack.c.b16 %v558, %v557
      %v570 = vpack.c.b16 %v560, %v559
      %v571 = vpack.c.b16 %v562, %v561
      %v572 = vpack.c.b16 %v564, %v563
      %581 = vmatprep.subr.bf16.mxu0 0
      %582 = vmatpush1.bf16.msra.mxu0 %v565
      %583 = vmatprep.subr.bf16.mxu0 0
      %584 = vmatpush1.bf16.msra.mxu0 %v566
      %585 = vmatprep.subr.bf16.mxu0 0
      %586 = vmatpush1.bf16.msra.mxu0 %v567
      %587 = vmatprep.subr.bf16.mxu0 0
      %588 = vmatpush1.bf16.msra.mxu0 %v568
      %589 = vmatprep.subr.bf16.mxu0 0
      %590 = vmatpush1.bf16.msra.mxu0 %v569
      %591 = vmatprep.subr.bf16.mxu0 0
      %592 = vmatpush1.bf16.msra.mxu0 %v570
      %593 = vmatprep.subr.bf16.mxu0 0
      %594 = vmatpush1.bf16.msra.mxu0 %v571
      %595 = vmatprep.subr.bf16.mxu0 0
      %596 = vmatpush1.bf16.msra.mxu0 %v572
      %597 = vmatprep.subr.bf16.mxu0 0
      %598 = vmatpush1.bf16.msra.mxu0 0
      %599 = vmatprep.subr.bf16.mxu0 0
      %600 = vmatpush1.bf16.msra.mxu0 0
      %601 = vmatprep.subr.bf16.mxu0 0
      %602 = vmatpush1.bf16.msra.mxu0 0
      %603 = vmatprep.subr.bf16.mxu0 0
      %604 = vmatpush1.bf16.msra.mxu0 0
      %605 = vmatprep.subr.bf16.mxu0 0
      %606 = vmatpush1.bf16.msra.mxu0 0
      %607 = vmatprep.subr.bf16.mxu0 0
      %608 = vmatpush1.bf16.msra.mxu0 0
      %609 = vmatprep.subr.bf16.mxu0 0
      %610 = vmatpush1.bf16.msra.mxu0 0
      %611 = vmatprep.subr.bf16.mxu0 0
      %612 = vmatpush1.bf16.msra.mxu0 0
      %613 = vmatprep.mubr.bf16.mxu0 0
      %614 = vmatmul.mubr.bf16.gmra.mrb[0].mxu0 %v502
      %v615 = vpop.f32.mrb[0].mxu0
      %v616 = vadd.f32 %v531, %v615
      %v617 = vpop.f32.mrb[0].mxu0
      %v618 = vpop.f32.mrb[0].mxu0
      %v619 = vadd.f32 %v531, %v618
      %v620 = vpop.f32.mrb[0].mxu0
      %621 = vmatprep.mubr.bf16.mxu0 0
      %622 = vmatmul.mubr.bf16.gmra.mrb[0].mxu0 %v503
      %v623 = vpop.f32.mrb[0].mxu0
      %v624 = vadd.f32 %v531, %v623
      %v625 = vpop.f32.mrb[0].mxu0
      %v626 = vpop.f32.mrb[0].mxu0
      %v627 = vadd.f32 %v531, %v626
      %v628 = vpop.f32.mrb[0].mxu0
      %629 = vmatprep.mubr.bf16.mxu0 0
      %630 = vmatmul.mubr.bf16.gmra.mrb[0].mxu0 %v504
      %v631 = vpop.f32.mrb[0].mxu0
      %v632 = vadd.f32 %v531, %v631
      %v633 = vpop.f32.mrb[0].mxu0
      %v634 = vpop.f32.mrb[0].mxu0
      %v635 = vadd.f32 %v531, %v634
      %v636 = vpop.f32.mrb[0].mxu0
      %637 = vmatprep.mubr.bf16.mxu0 0
      %638 = vmatmul.mubr.bf16.gmra.mrb[0].mxu0 %v505
      %v639 = vpop.f32.mrb[0].mxu0
      %v640 = vadd.f32 %v531, %v639
      %v641 = vpop.f32.mrb[0].mxu0
      %v642 = vpop.f32.mrb[0].mxu0
      %v643 = vadd.f32 %v531, %v642
      %v644 = vpop.f32.mrb[0].mxu0
      %645 = vmatprep.mubr.bf16.mxu0 0
      %646 = vmatmul.mubr.bf16.gmra.mrb[0].mxu0 %v506
      %v647 = vpop.f32.mrb[0].mxu0
      %v648 = vadd.f32 %v531, %v647
      %v649 = vpop.f32.mrb[0].mxu0
      %v650 = vpop.f32.mrb[0].mxu0
      %v651 = vadd.f32 %v531, %v650
      %v652 = vpop.f32.mrb[0].mxu0
      %653 = vmatprep.mubr.bf16.mxu0 0
      %654 = vmatmul.mubr.bf16.gmra.mrb[0].mxu0 %v507
      %v655 = vpop.f32.mrb[0].mxu0
      %v656 = vadd.f32 %v531, %v655
      %v657 = vpop.f32.mrb[0].mxu0
      %v658 = vpop.f32.mrb[0].mxu0
      %v659 = vadd.f32 %v531, %v658
      %v660 = vpop.f32.mrb[0].mxu0
      %661 = vmatprep.mubr.bf16.mxu0 0
      %662 = vmatmul.mubr.bf16.gmra.mrb[0].mxu0 %v508
      %v663 = vpop.f32.mrb[0].mxu0
      %v664 = vadd.f32 %v531, %v663
      %v665 = vpop.f32.mrb[0].mxu0
      %v666 = vpop.f32.mrb[0].mxu0
      %v667 = vadd.f32 %v531, %v666
      %v668 = vpop.f32.mrb[0].mxu0
      %669 = vmatprep.mubr.bf16.mxu0 0
      %670 = vmatmul.mubr.bf16.gmra.mrb[0].mxu0 %v509
      %v671 = vpop.f32.mrb[0].mxu0
      %v672 = vadd.f32 %v531, %v671
      %v673 = vpop.f32.mrb[0].mxu0
      %v674 = vpop.f32.mrb[0].mxu0
      %v675 = vadd.f32 %v531, %v674
      %v676 = vpop.f32.mrb[0].mxu0
      %677 = vdwg.mxu0
      %v678 = vmax.f32 %v616, 0.0
      %v679 = vmax.f32 %v619, 0.0
      %v680 = vmax.f32 %v624, 0.0
      %v681 = vmax.f32 %v627, 0.0
      %v682 = vmax.f32 %v632, 0.0
      %v683 = vmax.f32 %v635, 0.0
      %v684 = vmax.f32 %v640, 0.0
      %v685 = vmax.f32 %v643, 0.0
      %v686 = vmax.f32 %v648, 0.0
      %v687 = vmax.f32 %v651, 0.0
      %v688 = vmax.f32 %v656, 0.0
      %v689 = vmax.f32 %v659, 0.0
      %v690 = vmax.f32 %v664, 0.0
      %v691 = vmax.f32 %v667, 0.0
      %v692 = vmax.f32 %v672, 0.0
      %v693 = vmax.f32 %v675, 0.0
      %v694 = vpack.c.bf16 %v679, %v678
      %v695 = vpack.c.bf16 %v681, %v680
      %v696 = vpack.c.bf16 %v683, %v682
      %v697 = vpack.c.bf16 %v685, %v684
      %v698 = vpack.c.bf16 %v687, %v686
      %v699 = vpack.c.bf16 %v689, %v688
      %v700 = vpack.c.bf16 %v691, %v690
      %v701 = vpack.c.bf16 %v693, %v692
      %v702 = vld [vmem:[%s5] sm:$0xf]
      %v703 = vld [vmem:[%s5 + $0x4] sm:$0xf]
      %v704 = vld [vmem:[%s5 + $0x8] sm:$0xf]
      %v705 = vld [vmem:[%s5 + $0xc] sm:$0xf]
      %v706 = vld [vmem:[%s5 + $0x10] sm:$0xf]
      %v707 = vld [vmem:[%s5 + $0x14] sm:$0xf]
      %v708 = vld [vmem:[%s5 + $0x18] sm:$0xf]
      %v709 = vld [vmem:[%s5 + $0x1c] sm:$0xf]
      %v710 = vld [vmem:[%s5 + $0x20] sm:$0xf]
      %v711 = vld [vmem:[%s5 + $0x24] sm:$0xf]
      %v712 = vld [vmem:[%s5 + $0x28] sm:$0xf]
      %v713 = vld [vmem:[%s5 + $0x2c] sm:$0xf]
      %v714 = vld [vmem:[%s5 + $0x30] sm:$0xf]
      %v715 = vld [vmem:[%s5 + $0x34] sm:$0xf]
      %v716 = vld [vmem:[%s5 + $0x38] sm:$0xf]
      %v717 = vld [vmem:[%s5 + $0x3c] sm:$0xf]
      %v718 = vld [vmem:[#allocation2] sm:$0x1]
      %v720 = vlaneseq
      %v721 = vshrl.u32 %v720, 7
      %v722 = vsub.s32 0, %v721
      %v723 = vrot.slane %v718, %v722
      %v741 = vunpack.c.l.b16 %v702
      %v742 = vunpack.c.l.b16 %v703
      %v743 = vunpack.c.l.b16 %v704
      %v744 = vunpack.c.l.b16 %v705
      %v745 = vunpack.c.l.b16 %v706
      %v746 = vunpack.c.l.b16 %v707
      %v747 = vunpack.c.l.b16 %v708
      %v748 = vunpack.c.l.b16 %v709
      %v749 = vunpack.c.l.b16 %v710
      %v750 = vunpack.c.l.b16 %v711
      %v751 = vunpack.c.l.b16 %v712
      %v752 = vunpack.c.l.b16 %v713
      %v753 = vunpack.c.l.b16 %v714
      %v754 = vunpack.c.l.b16 %v715
      %v755 = vunpack.c.l.b16 %v716
      %v756 = vunpack.c.l.b16 %v717
      %v757 = vpack.c.b16 %v742, %v741
      %v758 = vpack.c.b16 %v744, %v743
      %v759 = vpack.c.b16 %v746, %v745
      %v760 = vpack.c.b16 %v748, %v747
      %v761 = vpack.c.b16 %v750, %v749
      %v762 = vpack.c.b16 %v752, %v751
      %v763 = vpack.c.b16 %v754, %v753
      %v764 = vpack.c.b16 %v756, %v755
      %773 = vmatprep.subr.bf16.mxu0 0
      %774 = vmatpush1.bf16.msra.mxu0 %v757
      %775 = vmatprep.subr.bf16.mxu0 0
      %776 = vmatpush1.bf16.msra.mxu0 %v758
      %777 = vmatprep.subr.bf16.mxu0 0
      %778 = vmatpush1.bf16.msra.mxu0 %v759
      %779 = vmatprep.subr.bf16.mxu0 0
      %780 = vmatpush1.bf16.msra.mxu0 %v760
      %781 = vmatprep.subr.bf16.mxu0 0
      %782 = vmatpush1.bf16.msra.mxu0 %v761
      %783 = vmatprep.subr.bf16.mxu0 0
      %784 = vmatpush1.bf16.msra.mxu0 %v762
      %785 = vmatprep.subr.bf16.mxu0 0
      %786 = vmatpush1.bf16.msra.mxu0 %v763
      %787 = vmatprep.subr.bf16.mxu0 0
      %788 = vmatpush1.bf16.msra.mxu0 %v764
      %789 = vmatprep.subr.bf16.mxu0 0
      %790 = vmatpush1.bf16.msra.mxu0 0
      %791 = vmatprep.subr.bf16.mxu0 0
      %792 = vmatpush1.bf16.msra.mxu0 0
      %793 = vmatprep.subr.bf16.mxu0 0
      %794 = vmatpush1.bf16.msra.mxu0 0
      %795 = vmatprep.subr.bf16.mxu0 0
      %796 = vmatpush1.bf16.msra.mxu0 0
      %797 = vmatprep.subr.bf16.mxu0 0
      %798 = vmatpush1.bf16.msra.mxu0 0
      %799 = vmatprep.subr.bf16.mxu0 0
      %800 = vmatpush1.bf16.msra.mxu0 0
      %801 = vmatprep.subr.bf16.mxu0 0
      %802 = vmatpush1.bf16.msra.mxu0 0
      %803 = vmatprep.subr.bf16.mxu0 0
      %804 = vmatpush1.bf16.msra.mxu0 0
      %805 = vmatprep.mubr.bf16.mxu0 0
      %806 = vmatmul.mubr.bf16.gmra.mrb[0].mxu0 %v694
      %v807 = vpop.f32.mrb[0].mxu0
      %v808 = vadd.f32 %v723, %v807
      %v809 = vpop.f32.mrb[0].mxu0
      %v810 = vpop.f32.mrb[0].mxu0
      %v811 = vadd.f32 %v723, %v810
      %v812 = vpop.f32.mrb[0].mxu0
      %813 = vmatprep.mubr.bf16.mxu0 0
      %814 = vmatmul.mubr.bf16.gmra.mrb[0].mxu0 %v695
      %v815 = vpop.f32.mrb[0].mxu0
      %v816 = vadd.f32 %v723, %v815
      %v817 = vpop.f32.mrb[0].mxu0
      %v818 = vpop.f32.mrb[0].mxu0
      %v819 = vadd.f32 %v723, %v818
      %v820 = vpop.f32.mrb[0].mxu0
      %821 = vmatprep.mubr.bf16.mxu0 0
      %822 = vmatmul.mubr.bf16.gmra.mrb[0].mxu0 %v696
      %v823 = vpop.f32.mrb[0].mxu0
      %v824 = vadd.f32 %v723, %v823
      %v825 = vpop.f32.mrb[0].mxu0
      %v826 = vpop.f32.mrb[0].mxu0
      %v827 = vadd.f32 %v723, %v826
      %v828 = vpop.f32.mrb[0].mxu0
      %829 = vmatprep.mubr.bf16.mxu0 0
      %830 = vmatmul.mubr.bf16.gmra.mrb[0].mxu0 %v697
      %v831 = vpop.f32.mrb[0].mxu0
      %v832 = vadd.f32 %v723, %v831
      %v833 = vpop.f32.mrb[0].mxu0
      %v834 = vpop.f32.mrb[0].mxu0
      %v835 = vadd.f32 %v723, %v834
      %v836 = vpop.f32.mrb[0].mxu0
      %837 = vmatprep.mubr.bf16.mxu0 0
      %838 = vmatmul.mubr.bf16.gmra.mrb[0].mxu0 %v698
      %v839 = vpop.f32.mrb[0].mxu0
      %v840 = vadd.f32 %v723, %v839
      %v841 = vpop.f32.mrb[0].mxu0
      %v842 = vpop.f32.mrb[0].mxu0
      %v843 = vadd.f32 %v723, %v842
      %v844 = vpop.f32.mrb[0].mxu0
      %845 = vmatprep.mubr.bf16.mxu0 0
      %846 = vmatmul.mubr.bf16.gmra.mrb[0].mxu0 %v699
      %v847 = vpop.f32.mrb[0].mxu0
      %v848 = vadd.f32 %v723, %v847
      %v849 = vpop.f32.mrb[0].mxu0
      %v850 = vpop.f32.mrb[0].mxu0
      %v851 = vadd.f32 %v723, %v850
      %v852 = vpop.f32.mrb[0].mxu0
      %853 = vmatprep.mubr.bf16.mxu0 0
      %854 = vmatmul.mubr.bf16.gmra.mrb[0].mxu0 %v700
      %v855 = vpop.f32.mrb[0].mxu0
      %v856 = vadd.f32 %v723, %v855
      %v857 = vpop.f32.mrb[0].mxu0
      %v858 = vpop.f32.mrb[0].mxu0
      %v859 = vadd.f32 %v723, %v858
      %v860 = vpop.f32.mrb[0].mxu0
      %861 = vmatprep.mubr.bf16.mxu0 0
      %862 = vmatmul.mubr.bf16.gmra.mrb[0].mxu0 %v701
      %v863 = vpop.f32.mrb[0].mxu0
      %v864 = vadd.f32 %v723, %v863
      %v865 = vpop.f32.mrb[0].mxu0
      %v866 = vpop.f32.mrb[0].mxu0
      %v867 = vadd.f32 %v723, %v866
      %v868 = vpop.f32.mrb[0].mxu0
      %869 = vdwg.mxu0
      %v870 = vxor.u32 %v808, 2147483648
      %v871 = vxor.u32 %v811, 2147483648
      %v872 = vxor.u32 %v816, 2147483648
      %v873 = vxor.u32 %v819, 2147483648
      %v874 = vxor.u32 %v824, 2147483648
      %v875 = vxor.u32 %v827, 2147483648
      %v876 = vxor.u32 %v832, 2147483648
      %v877 = vxor.u32 %v835, 2147483648
      %v878 = vxor.u32 %v840, 2147483648
      %v879 = vxor.u32 %v843, 2147483648
      %v880 = vxor.u32 %v848, 2147483648
      %v881 = vxor.u32 %v851, 2147483648
      %v882 = vxor.u32 %v856, 2147483648
      %v883 = vxor.u32 %v859, 2147483648
      %v884 = vxor.u32 %v864, 2147483648
      %v885 = vxor.u32 %v867, 2147483648
      %v886 = vmul.f32 %v870, 1.442695
      %v887 = vpow.pop %v886
      %v888 = vmul.f32 %v871, 1.442695
      %v889 = vpow.pop %v888
      %v890 = vmul.f32 %v872, 1.442695
      %v891 = vpow.pop %v890
      %v892 = vmul.f32 %v873, 1.442695
      %v893 = vpow.pop %v892
      %v894 = vmul.f32 %v874, 1.442695
      %v895 = vpow.pop %v894
      %v896 = vmul.f32 %v875, 1.442695
      %v897 = vpow.pop %v896
      %v898 = vmul.f32 %v876, 1.442695
      %v899 = vpow.pop %v898
      %v900 = vmul.f32 %v877, 1.442695
      %v901 = vpow.pop %v900
      %v902 = vmul.f32 %v878, 1.442695
      %v903 = vpow.pop %v902
      %v904 = vmul.f32 %v879, 1.442695
      %v905 = vpow.pop %v904
      %v906 = vmul.f32 %v880, 1.442695
      %v907 = vpow.pop %v906
      %v908 = vmul.f32 %v881, 1.442695
      %v909 = vpow.pop %v908
      %v910 = vmul.f32 %v882, 1.442695
      %v911 = vpow.pop %v910
      %v912 = vmul.f32 %v883, 1.442695
      %v913 = vpow.pop %v912
      %v914 = vmul.f32 %v884, 1.442695
      %v915 = vpow.pop %v914
      %v916 = vmul.f32 %v885, 1.442695
      %v917 = vpow.pop %v916
      %v918 = vadd.f32 %v887, 1.0
      %v919 = vadd.f32 %v889, 1.0
      %v920 = vadd.f32 %v891, 1.0
      %v921 = vadd.f32 %v893, 1.0
      %v922 = vadd.f32 %v895, 1.0
      %v923 = vadd.f32 %v897, 1.0
      %v924 = vadd.f32 %v899, 1.0
      %v925 = vadd.f32 %v901, 1.0
      %v926 = vadd.f32 %v903, 1.0
      %v927 = vadd.f32 %v905, 1.0
      %v928 = vadd.f32 %v907, 1.0
      %v929 = vadd.f32 %v909, 1.0
      %v930 = vadd.f32 %v911, 1.0
      %v931 = vadd.f32 %v913, 1.0
      %v932 = vadd.f32 %v915, 1.0
      %v933 = vadd.f32 %v917, 1.0
      %v934 = vrcp.pop %v918
      %v935 = vmul.f32 1.0, %v934
      %v936 = vrcp.pop %v919
      %v937 = vmul.f32 1.0, %v936
      %v938 = vrcp.pop %v920
      %v939 = vmul.f32 1.0, %v938
      %v940 = vrcp.pop %v921
      %v941 = vmul.f32 1.0, %v940
      %v942 = vrcp.pop %v922
      %v943 = vmul.f32 1.0, %v942
      %v944 = vrcp.pop %v923
      %v945 = vmul.f32 1.0, %v944
      %v946 = vrcp.pop %v924
      %v947 = vmul.f32 1.0, %v946
      %v948 = vrcp.pop %v925
      %v949 = vmul.f32 1.0, %v948
      %v950 = vrcp.pop %v926
      %v951 = vmul.f32 1.0, %v950
      %v952 = vrcp.pop %v927
      %v953 = vmul.f32 1.0, %v952
      %v954 = vrcp.pop %v928
      %v955 = vmul.f32 1.0, %v954
      %v956 = vrcp.pop %v929
      %v957 = vmul.f32 1.0, %v956
      %v958 = vrcp.pop %v930
      %v959 = vmul.f32 1.0, %v958
      %v960 = vrcp.pop %v931
      %v961 = vmul.f32 1.0, %v960
      %v962 = vrcp.pop %v932
      %v963 = vmul.f32 1.0, %v962
      %v964 = vrcp.pop %v933
      %v965 = vmul.f32 1.0, %v964
      %vm966 = vcmask 7168
      %967 = vst.msk [vmem:[%s282] sm:$0xff] %vm966, %v935
      %968 = vst.msk [vmem:[%s282 + $0x8] sm:$0xff] %vm966, %v937
      %969 = vst.msk [vmem:[%s282 + $0x10] sm:$0xff] %vm966, %v939
      %970 = vst.msk [vmem:[%s282 + $0x18] sm:$0xff] %vm966, %v941
      %971 = vst.msk [vmem:[%s282 + $0x20] sm:$0xff] %vm966, %v943
      %972 = vst.msk [vmem:[%s282 + $0x28] sm:$0xff] %vm966, %v945
      %973 = vst.msk [vmem:[%s282 + $0x30] sm:$0xff] %vm966, %v947
      %974 = vst.msk [vmem:[%s282 + $0x38] sm:$0xff] %vm966, %v949
      %975 = vst.msk [vmem:[%s282 + $0x40] sm:$0xff] %vm966, %v951
      %976 = vst.msk [vmem:[%s282 + $0x48] sm:$0xff] %vm966, %v953
      %977 = vst.msk [vmem:[%s282 + $0x50] sm:$0xff] %vm966, %v955
      %978 = vst.msk [vmem:[%s282 + $0x58] sm:$0xff] %vm966, %v957
      %979 = vst.msk [vmem:[%s282 + $0x60] sm:$0xff] %vm966, %v959
      %980 = vst.msk [vmem:[%s282 + $0x68] sm:$0xff] %vm966, %v961
      %981 = vst.msk [vmem:[%s282 + $0x70] sm:$0xff] %vm966, %v963
      %982 = vst.msk [vmem:[%s282 + $0x78] sm:$0xff] %vm966, %v965
      %s983 = smul.u32 16, %s20
      %p984 = scmp.lt.s32.totalorder %s983, 31
      %s985 = scalar_select %p984, %s983, 31
      %s986 = smul.addr %s985, 8
      %s987 = scalar_lea.vmem %s7, %s986
      // Predicated region
      $region49: #{tpu_custom_call.1} parent=47 // pred_check
        %p988 = pneg %p190
      $region50: #{tpu_custom_call.1} parent=47 // pred_check_branch
        %990 = sbr.rel (%p988) target = $region52
      $region51: #{tpu_custom_call.1} parent=47 // pred_region
        %s991 = smul.u32 16, %s20
      $region52: #{tpu_custom_call.1} parent=47 // pred_fallthru
        _
    $region48: #{tpu_custom_call.1} parent=5 // pred_fallthru
      _
    %p992 = scmp.le.s32.totalorder 2, %s15
    // Predicated region
    $region53: #{tpu_custom_call.1} parent=5 // pred_check
      %p993 = pneg %p992
    $region54: #{tpu_custom_call.1} parent=5 // pred_check_branch
      %995 = sbr.rel (%p993) target = $region56
    $region55: #{tpu_custom_call.1} parent=5 // pred_region
      %s996 = ssub.s32 %s15, 2
      // Predicated region
      $region57: #{tpu_custom_call.1} parent=55 // pred_check
        %p997 = pneg %p196
      $region58: #{tpu_custom_call.1} parent=55 // pred_check_branch
        %999 = sbr.rel (%p997) target = $region60
      $region59: #{tpu_custom_call.1} parent=55 // pred_region
        %s1000 = smul.u32 16, %s21
        %p1001 = scmp.lt.s32.totalorder %s1000, 31
        %s1002 = scalar_select %p1001, %s1000, 31
        %s1003 = smul.addr %s1002, 8
        %s1004 = scalar_lea.vmem %s7, %s1003
      $region60: #{tpu_custom_call.1} parent=55 // pred_fallthru
        _
    $region56: #{tpu_custom_call.1} parent=5 // pred_fallthru
      _
  $region6: #{tpu_custom_call.1} parent=0 // loop_footer
    %s19 = sadd.s32 1, %s15
  $region7: #{tpu_custom_call.1} parent=0 // loop_footer_branch
    %14 = sbr.rel target = $region3
  $region8: #{tpu_custom_call.1} parent=0 // loop_exit
    _

</llo_original>
